<compile_context>
chip_gen: v5e
topology: v5e:2x2
jax: 0.10.0
libtpu: 0.0.40
codegen_flags: <defaults>
</compile_context>

<pallas_src>
import jax
import jax.numpy as jnp
from jax.experimental import pallas as pl
from jax.experimental.pallas import tpu as pltpu


def _vmem_capacity_bytes():
    try:
        return int(pltpu.get_tpu_info().vmem_capacity_bytes)
    except Exception:
        return 64 * 1024 * 1024  # conservative default (v7x has the smallest VMEM)


def _make_partials_kernel(C, TH, H_valid, needs_h_mask):
    """Build the per-(n, w-tile, h-tile) kernel accumulating (6, C, TW) partials."""

    def kernel(pred_ref, tgt_ref, out_ref, acc_ref):
        h = pl.program_id(2)

        @pl.when(h == 0)
        def _init():
            acc_ref[...] = jnp.zeros_like(acc_ref)

        tgt = tgt_ref[0]                                    # (TH, TW) int32
        TW = tgt.shape[1]
        logits = [pred_ref[0, c].astype(jnp.float32) for c in range(C)]

        # Running max / argmax over classes (first occurrence on ties, like
        # torch.argmax); unrolled static loop -> no (C, TH, TW) iota tensor.
        m = logits[0]
        amax = jnp.zeros(tgt.shape, jnp.int32)
        for c in range(1, C):
            better = logits[c] > m
            amax = jnp.where(better, c, amax)
            m = jnp.where(better, logits[c], m)

        es = [jnp.exp(logits[c] - m) for c in range(C)]     # EUP
        s = es[0]
        for c in range(1, C):
            s = s + es[c]
        inv_s = pl.reciprocal(s, approx=True)               # one recip per pixel (EUP)
        mls = m + jnp.log(s)                                # max + log-sum-exp

        if needs_h_mask:
            row = h * TH + jax.lax.broadcasted_iota(jnp.int32, tgt.shape, 0)
            rvalid = row < H_valid
            agree_f = jnp.where(jnp.logical_and(amax == tgt, rvalid), 1.0, 0.0)
        else:
            rvalid = None
            agree_f = jnp.where(amax == tgt, 1.0, 0.0)

        G = TH // 8

        def fold8(x):
            # (TH, TW) -> (8, TW): sublane-aligned vreg adds only (pure VPU);
            # the final 8->1 cross-sublane reduce is deferred to the last h.
            if G == 1:
                return x
            return jnp.sum(x.reshape(G, 8, TW), axis=0)

        per_q = [[], [], [], [], [], []]   # oh, probs, tin, nll, pm, ipm
        for c in range(C):
            is_tgt = tgt == c
            is_pm = amax == c
            if needs_h_mask:
                is_tgt = jnp.logical_and(is_tgt, rvalid)
                is_pm = jnp.logical_and(is_pm, rvalid)
            prob = es[c] * inv_s
            prob_v = jnp.where(rvalid, prob, 0.0) if needs_h_mask else prob
            per_q[0].append(fold8(jnp.where(is_tgt, 1.0, 0.0)))       # |target == c|
            per_q[1].append(fold8(prob_v))                            # sum softmax
            per_q[2].append(fold8(jnp.where(is_tgt, prob, 0.0)))      # Tversky inter
            per_q[3].append(fold8(jnp.where(is_tgt, mls - logits[c], 0.0)))  # NLL
            per_q[4].append(fold8(jnp.where(is_pm, 1.0, 0.0)))        # |argmax == c|
            per_q[5].append(fold8(jnp.where(is_tgt, agree_f, 0.0)))   # dice inter

        upd = jnp.stack([jnp.stack(q, axis=0) for q in per_q], axis=0)  # (6,C,8,TW)
        acc_ref[...] += upd                                 # single RMW per step

        @pl.when(h == pl.num_programs(2) - 1)
        def _finalize():
            # One 8->1 cross-sublane reduce and one lane-dense store per image.
            out_ref[0] = jnp.sum(acc_ref[...], axis=2)      # (6, C, TW)

    return kernel


def _choose_block_w(W_used, N):
    if W_used % 128 != 0 or W_used <= 128:
        return W_used                      # single full-width block (legal: full dim)
    min_tiles = 2 if N < 2 else 1          # keep both v7x TensorCores fed when N == 1
    for tw in (1024, 512, 256, 128):
        if W_used % tw == 0 and W_used // tw >= min_tiles:
            return tw
    return W_used


def _choose_block_h(C, H_pad, TW, itemsize, vmem_cap):
    """Largest TH (multiple of 8, dividing H_pad) whose per-step working set
    fits the generation-aware budget (bigger tiles on 128-MiB v5e/v6e)."""
    budget = (24 << 20) if vmem_cap >= (100 << 20) else (10 << 20)

    def step_bytes(th):
        return (2 * C * th * TW * itemsize        # double-buffered pred DMA tiles
                + 2 * th * TW * 4                 # double-buffered target tiles
                + (2 * C + 8) * th * TW * 4)      # in-kernel f32 temporaries

    th = 8
    for cand in range(8, H_pad + 1, 8):
        if H_pad % cand == 0 and step_bytes(cand) <= budget:
            th = cand
    return th


def tversky_ce_dice_loss(pred, target, *, block_h=None, block_w=None,
                         cross_entropy_weight=0.5, tversky_weight=0.5):
    """pred: (N, C, H, W) float logits; target: (N, H, W) integer labels."""
    if abs(float(cross_entropy_weight) + float(tversky_weight) - 1.0) > 1e-6:
        raise ValueError('Cross Entropy weight and Tversky weight should sum to 1')
    N, C, H, W = pred.shape
    target = target.astype(jnp.int32)
    # TODO(synk): target could be DMA'd as int8 (respecting (32,128) tiling) to
    # shave ~20% HBM traffic for small C; kept int32 for simplicity.

    # H padded to a sublane multiple (invalid rows masked in-kernel); W padded
    # to a lane multiple only when the overhead is small (padded columns are
    # sliced off the partials before the finalize).
    H_pad = ((H + 7) // 8) * 8
    W_lane = ((W + 127) // 128) * 128
    W_used = W_lane if (W % 128 != 0 and W_lane <= int(W * 1.3)) else W
    if H_pad != H or W_used != W:
        pred = jnp.pad(pred, ((0, 0), (0, 0), (0, H_pad - H), (0, W_used - W)))
        target = jnp.pad(target, ((0, 0), (0, H_pad - H), (0, W_used - W)))

    vmem_cap = _vmem_capacity_bytes()
    itemsize = pred.dtype.itemsize          # bf16 logits halve HBM traffic / DMA tiles
    if block_w is None:
        block_w = _choose_block_w(W_used, N)
    assert W_used % block_w == 0, "block_w must divide (padded) W"
    if block_h is None:
        block_h = _choose_block_h(C, H_pad, block_w, itemsize, vmem_cap)
    assert H_pad % block_h == 0 and block_h % 8 == 0, "block_h must be a multiple of 8 dividing padded H"
    n_w, n_h = W_used // block_w, H_pad // block_h

    # Explicit VMEM budget — never clamped below the actual requirement.
    pred_tile = C * block_h * block_w * itemsize
    tgt_tile = block_h * block_w * 4
    out_tile = 6 * C * block_w * 4
    acc_bytes = 6 * C * 8 * block_w * 4
    work_bytes = (2 * C + 8) * block_h * block_w * 4
    req = 2 * (pred_tile + tgt_tile + out_tile) + acc_bytes + work_bytes
    vmem_limit = max(req + (2 << 20), 32 << 20)
    vmem_limit = int(min(vmem_limit, max(req + (2 << 20), int(vmem_cap * 0.9))))

    kernel = _make_partials_kernel(C, block_h, H, H_pad != H)

    partials = pl.pallas_call(
        kernel,
        out_shape=jax.ShapeDtypeStruct((N, 6, C, W_used), jnp.float32),
        grid_spec=pltpu.PrefetchScalarGridSpec(
            num_scalar_prefetch=0,
            grid=(N, n_w, n_h),                          # reduction (H) axis last
            in_specs=[
                pl.BlockSpec((1, C, block_h, block_w), lambda n, w, h: (n, 0, h, w)),
                pl.BlockSpec((1, block_h, block_w), lambda n, w, h: (n, h, w)),
            ],
            out_specs=pl.BlockSpec((1, 6, C, block_w), lambda n, w, h: (n, 0, 0, w)),
            scratch_shapes=[pltpu.VMEM((6, C, 8, block_w), jnp.float32)],
        ),
        compiler_params=pltpu.CompilerParams(
            # N and W tiles are independent -> usable by both v7x TensorCores
            # even for N == 1; the H axis carries the accumulator.
            dimension_semantics=("parallel", "parallel", "arbitrary"),
            vmem_limit_bytes=vmem_limit),
    )(pred, target)

    # ---- tiny finalize on (C, W) / (C,) tensors (plain JAX; negligible) ----
    partials = partials[..., :W]                 # drop padded W columns
    totals = jnp.sum(partials, axis=0)           # (6, C, W): sum over batch
    oh_sum, probs_sum, tin = totals[0], totals[1], totals[2]
    nll, pm_sum, ipm_sum = totals[3], totals[4], totals[5]

    cnt = jnp.sum(oh_sum, axis=-1)               # (C,) |target == c|
    pcnt = jnp.sum(pm_sum, axis=-1)              # (C,) |argmax == c|
    icnt = jnp.sum(ipm_sum, axis=-1)             # (C,) intersection count
    nll_c = jnp.sum(nll, axis=-1)                # (C,) sum of NLL where target == c

    # class_dice weights: 1 - 2*inter / (pred_count + target_count + eps)
    # TODO(synk): reference computes dice in float64 numpy; we stay in f32.
    dice = 1.0 - 2.0 * icnt / (pcnt + cnt + 1e-6)
    # weighted cross entropy (reduction='mean' with per-class weights)
    ce = jnp.sum(dice * nll_c) / jnp.sum(dice * cnt)

    # Tversky (alpha = beta = 0.5); reference reduces over dims (0, 2) only,
    # no smoothing term (same as the PyTorch code).
    tfp = probs_sum - tin
    tfn = oh_sum - tin
    ratio = tin / (tin + 0.5 * tfp + 0.5 * tfn)
    tv = 1.0 - jnp.mean(ratio)

    return cross_entropy_weight * ce + tversky_weight * tv


def _reference_loss(pred, target):
    """Pure-JAX replica of the PyTorch module, for a sanity check."""
    N, C, H, W = pred.shape
    logits = pred.astype(jnp.float32)
    probs = jax.nn.softmax(logits, axis=1)
    logp = jax.nn.log_softmax(logits, axis=1)
    oh = jax.nn.one_hot(target, C, axis=1, dtype=jnp.float32)
    pm = jax.nn.one_hot(jnp.argmax(logits, axis=1), C, axis=1, dtype=jnp.float32)
    cnt = jnp.sum(oh, axis=(0, 2, 3))
    pcnt = jnp.sum(pm, axis=(0, 2, 3))
    icnt = jnp.sum(pm * oh, axis=(0, 2, 3))
    dice = 1.0 - 2.0 * icnt / (pcnt + cnt + 1e-6)
    nll = -jnp.sum(oh * logp, axis=1)
    w = dice[target]
    ce = jnp.sum(w * nll) / jnp.sum(w)
    inter = jnp.sum(probs * oh, axis=(0, 2))
    fps = jnp.sum(probs * (1 - oh), axis=(0, 2))
    fns = jnp.sum((1 - probs) * oh, axis=(0, 2))
    tv = 1.0 - jnp.mean(inter / (inter + 0.5 * fps + 0.5 * fns))
    return 0.5 * ce + 0.5 * tv


def _check(pred, target, **kwargs):
    loss = jax.block_until_ready(tversky_ce_dice_loss(pred, target, **kwargs))
    assert bool(jnp.isfinite(loss)), "loss is not finite"
    ref = jax.block_until_ready(_reference_loss(pred, target))
    assert abs(float(loss) - float(ref)) <= 2e-3 + 2e-2 * abs(float(ref)), \
        f"kernel {float(loss)} vs reference {float(ref)}"


if __name__ == "__main__":
    key = jax.random.PRNGKey(0)

    # Main case: block_h=8 forces the H-tiled accumulation path (grid (2,1,2)).
    N, C, H, W = 2, 4, 16, 16
    k_pred, k_tgt, key = jax.random.split(key, 3)
    pred = jax.random.normal(k_pred, (N, C, H, W), dtype=jnp.float32)
    target = jax.random.randint(k_tgt, (N, H, W), 0, C, dtype=jnp.int32)
    _check(pred, target, block_h=8)

    # Odd-H case: exercises the H-padding + in-kernel row-validity mask path.
    N2, C2, H2, W2 = 1, 3, 13, 16
    k_pred2, k_tgt2, key = jax.random.split(key, 3)
    pred2 = jax.random.normal(k_pred2, (N2, C2, H2, W2), dtype=jnp.float32)
    target2 = jax.random.randint(k_tgt2, (N2, H2, W2), 0, C2, dtype=jnp.int32)
    _check(pred2, target2)

    print("KERNEL_OK")
</pallas_src>

<mosaic_0001>
module attributes {stable_mosaic.version = 11 : i64} {
  func.func @kernel(%arg0: i32, %arg1: i32, %arg2: i32, %arg3: memref<1x4x8x16xf32, #tpu.memory_space<vmem>>, %arg4: memref<1x8x16xi32, #tpu.memory_space<vmem>>, %arg5: memref<1x6x4x16xf32, #tpu.memory_space<vmem>>, %arg6: memref<6x4x8x16xf32, #tpu.memory_space<vmem>>) attributes {dimension_semantics = [#tpu.dimension_semantics<parallel>, #tpu.dimension_semantics<parallel>, #tpu.dimension_semantics<arbitrary>], iteration_bounds = array<i64: 2, 1, 2>, scalar_prefetch = 0 : i64, scratch_operands = 1 : i64, tpu.core_type = #tpu.core_type<tc>, window_params = [{transform_indices = @transform_0, window_bounds = array<i64: 1, 4, 8, 16>}, {transform_indices = @transform_1, window_bounds = array<i64: 1, 8, 16>}, {transform_indices = @transform_2, window_bounds = array<i64: 1, 6, 4, 16>}]} {
    %c0_i32 = arith.constant 0 : i32
    %0 = arith.cmpi eq, %arg2, %c0_i32 : i32
    %1 = arith.extui %0 : i1 to i32
    %c0_i32_0 = arith.constant 0 : i32
    %2 = arith.cmpi ne, %1, %c0_i32_0 : i32
    scf.if %2 {
      %cst_64 = arith.constant 0.000000e+00 : f32
      %159 = vector.broadcast %cst_64 : f32 to vector<6x4x8x16xf32>
      %c0_65 = arith.constant 0 : index
      %c0_66 = arith.constant 0 : index
      %c0_67 = arith.constant 0 : index
      %c0_68 = arith.constant 0 : index
      %160 = vector.load %arg6[%c0_65, %c0_66, %c0_67, %c0_68] : memref<6x4x8x16xf32, #tpu.memory_space<vmem>>, vector<6x4x8x16xf32>
      tpu.vector_store %arg6[%c0_65, %c0_66, %c0_67, %c0_68], %159 {strides = array<i32>} : memref<6x4x8x16xf32, #tpu.memory_space<vmem>>, vector<6x4x8x16xf32>,
    } else {
    }
    %c0 = arith.constant 0 : index
    %c0_1 = arith.constant 0 : index
    %c0_2 = arith.constant 0 : index
    %3 = vector.load %arg4[%c0, %c0_1, %c0_2] : memref<1x8x16xi32, #tpu.memory_space<vmem>>, vector<1x8x16xi32>
    %4 = vector.shape_cast %3 : vector<1x8x16xi32> to vector<8x16xi32>
    %c0_3 = arith.constant 0 : index
    %c0_4 = arith.constant 0 : index
    %c0_5 = arith.constant 0 : index
    %c0_6 = arith.constant 0 : index
    %5 = vector.load %arg3[%c0_3, %c0_4, %c0_5, %c0_6] : memref<1x4x8x16xf32, #tpu.memory_space<vmem>>, vector<1x1x8x16xf32>
    %6 = vector.shape_cast %5 : vector<1x1x8x16xf32> to vector<8x16xf32>
    %c0_7 = arith.constant 0 : index
    %c1 = arith.constant 1 : index
    %c0_8 = arith.constant 0 : index
    %c0_9 = arith.constant 0 : index
    %7 = vector.load %arg3[%c0_7, %c1, %c0_8, %c0_9] : memref<1x4x8x16xf32, #tpu.memory_space<vmem>>, vector<1x1x8x16xf32>
    %8 = vector.shape_cast %7 : vector<1x1x8x16xf32> to vector<8x16xf32>
    %c0_10 = arith.constant 0 : index
    %c2 = arith.constant 2 : index
    %c0_11 = arith.constant 0 : index
    %c0_12 = arith.constant 0 : index
    %9 = vector.load %arg3[%c0_10, %c2, %c0_11, %c0_12] : memref<1x4x8x16xf32, #tpu.memory_space<vmem>>, vector<1x1x8x16xf32>
    %10 = vector.shape_cast %9 : vector<1x1x8x16xf32> to vector<8x16xf32>
    %c0_13 = arith.constant 0 : index
    %c3 = arith.constant 3 : index
    %c0_14 = arith.constant 0 : index
    %c0_15 = arith.constant 0 : index
    %11 = vector.load %arg3[%c0_13, %c3, %c0_14, %c0_15] : memref<1x4x8x16xf32, #tpu.memory_space<vmem>>, vector<1x1x8x16xf32>
    %12 = vector.shape_cast %11 : vector<1x1x8x16xf32> to vector<8x16xf32>
    %c0_i32_16 = arith.constant 0 : i32
    %13 = vector.broadcast %c0_i32_16 : i32 to vector<8x16xi32>
    %14 = arith.cmpf ogt, %8, %6 : vector<8x16xf32>
    %c1_i32 = arith.constant 1 : i32
    %15 = vector.broadcast %c1_i32 : i32 to vector<8x16xi32>
    %16 = arith.select %14, %15, %13 : vector<8x16xi1>, vector<8x16xi32>
    %17 = arith.select %14, %8, %6 : vector<8x16xi1>, vector<8x16xf32>
    %18 = arith.cmpf ogt, %10, %17 : vector<8x16xf32>
    %c2_i32 = arith.constant 2 : i32
    %19 = vector.broadcast %c2_i32 : i32 to vector<8x16xi32>
    %20 = arith.select %18, %19, %16 : vector<8x16xi1>, vector<8x16xi32>
    %21 = arith.select %18, %10, %17 : vector<8x16xi1>, vector<8x16xf32>
    %22 = arith.cmpf ogt, %12, %21 : vector<8x16xf32>
    %c3_i32 = arith.constant 3 : i32
    %23 = vector.broadcast %c3_i32 : i32 to vector<8x16xi32>
    %24 = arith.select %22, %23, %20 : vector<8x16xi1>, vector<8x16xi32>
    %25 = arith.select %22, %12, %21 : vector<8x16xi1>, vector<8x16xf32>
    %26 = arith.subf %6, %25 : vector<8x16xf32>
    %27 = math.exp %26 : vector<8x16xf32>
    %28 = arith.subf %8, %25 : vector<8x16xf32>
    %29 = math.exp %28 : vector<8x16xf32>
    %30 = arith.subf %10, %25 : vector<8x16xf32>
    %31 = math.exp %30 : vector<8x16xf32>
    %32 = arith.subf %12, %25 : vector<8x16xf32>
    %33 = math.exp %32 : vector<8x16xf32>
    %34 = arith.addf %27, %29 : vector<8x16xf32>
    %35 = arith.addf %34, %31 : vector<8x16xf32>
    %36 = arith.addf %35, %33 : vector<8x16xf32>
    %37 = tpu.reciprocal %36 {approx = true} : vector<8x16xf32> -> vector<8x16xf32>
    %38 = math.log %36 : vector<8x16xf32>
    %39 = arith.addf %25, %38 : vector<8x16xf32>
    %40 = arith.cmpi eq, %24, %4 : vector<8x16xi32>
    %cst = arith.constant 1.000000e+00 : f32
    %cst_17 = arith.constant 0.000000e+00 : f32
    %41 = vector.broadcast %cst : f32 to vector<8x16xf32>
    %42 = vector.broadcast %cst_17 : f32 to vector<8x16xf32>
    %43 = arith.select %40, %41, %42 : vector<8x16xi1>, vector<8x16xf32>
    %c0_i32_18 = arith.constant 0 : i32
    %44 = vector.broadcast %c0_i32_18 : i32 to vector<8x16xi32>
    %45 = arith.cmpi eq, %4, %44 : vector<8x16xi32>
    %c0_i32_19 = arith.constant 0 : i32
    %46 = vector.broadcast %c0_i32_19 : i32 to vector<8x16xi32>
    %47 = arith.cmpi eq, %24, %46 : vector<8x16xi32>
    %48 = arith.mulf %27, %37 : vector<8x16xf32>
    %cst_20 = arith.constant 1.000000e+00 : f32
    %cst_21 = arith.constant 0.000000e+00 : f32
    %49 = vector.broadcast %cst_20 : f32 to vector<8x16xf32>
    %50 = vector.broadcast %cst_21 : f32 to vector<8x16xf32>
    %51 = arith.select %45, %49, %50 : vector<8x16xi1>, vector<8x16xf32>
    %cst_22 = arith.constant 0.000000e+00 : f32
    %52 = vector.broadcast %cst_22 : f32 to vector<8x16xf32>
    %53 = arith.select %45, %48, %52 : vector<8x16xi1>, vector<8x16xf32>
    %54 = arith.subf %39, %6 : vector<8x16xf32>
    %cst_23 = arith.constant 0.000000e+00 : f32
    %55 = vector.broadcast %cst_23 : f32 to vector<8x16xf32>
    %56 = arith.select %45, %54, %55 : vector<8x16xi1>, vector<8x16xf32>
    %cst_24 = arith.constant 1.000000e+00 : f32
    %cst_25 = arith.constant 0.000000e+00 : f32
    %57 = vector.broadcast %cst_24 : f32 to vector<8x16xf32>
    %58 = vector.broadcast %cst_25 : f32 to vector<8x16xf32>
    %59 = arith.select %47, %57, %58 : vector<8x16xi1>, vector<8x16xf32>
    %cst_26 = arith.constant 0.000000e+00 : f32
    %60 = vector.broadcast %cst_26 : f32 to vector<8x16xf32>
    %61 = arith.select %45, %43, %60 : vector<8x16xi1>, vector<8x16xf32>
    %c1_i32_27 = arith.constant 1 : i32
    %62 = vector.broadcast %c1_i32_27 : i32 to vector<8x16xi32>
    %63 = arith.cmpi eq, %4, %62 : vector<8x16xi32>
    %c1_i32_28 = arith.constant 1 : i32
    %64 = vector.broadcast %c1_i32_28 : i32 to vector<8x16xi32>
    %65 = arith.cmpi eq, %24, %64 : vector<8x16xi32>
    %66 = arith.mulf %29, %37 : vector<8x16xf32>
    %cst_29 = arith.constant 1.000000e+00 : f32
    %cst_30 = arith.constant 0.000000e+00 : f32
    %67 = vector.broadcast %cst_29 : f32 to vector<8x16xf32>
    %68 = vector.broadcast %cst_30 : f32 to vector<8x16xf32>
    %69 = arith.select %63, %67, %68 : vector<8x16xi1>, vector<8x16xf32>
    %cst_31 = arith.constant 0.000000e+00 : f32
    %70 = vector.broadcast %cst_31 : f32 to vector<8x16xf32>
    %71 = arith.select %63, %66, %70 : vector<8x16xi1>, vector<8x16xf32>
    %72 = arith.subf %39, %8 : vector<8x16xf32>
    %cst_32 = arith.constant 0.000000e+00 : f32
    %73 = vector.broadcast %cst_32 : f32 to vector<8x16xf32>
    %74 = arith.select %63, %72, %73 : vector<8x16xi1>, vector<8x16xf32>
    %cst_33 = arith.constant 1.000000e+00 : f32
    %cst_34 = arith.constant 0.000000e+00 : f32
    %75 = vector.broadcast %cst_33 : f32 to vector<8x16xf32>
    %76 = vector.broadcast %cst_34 : f32 to vector<8x16xf32>
    %77 = arith.select %65, %75, %76 : vector<8x16xi1>, vector<8x16xf32>
    %cst_35 = arith.constant 0.000000e+00 : f32
    %78 = vector.broadcast %cst_35 : f32 to vector<8x16xf32>
    %79 = arith.select %63, %43, %78 : vector<8x16xi1>, vector<8x16xf32>
    %c2_i32_36 = arith.constant 2 : i32
    %80 = vector.broadcast %c2_i32_36 : i32 to vector<8x16xi32>
    %81 = arith.cmpi eq, %4, %80 : vector<8x16xi32>
    %c2_i32_37 = arith.constant 2 : i32
    %82 = vector.broadcast %c2_i32_37 : i32 to vector<8x16xi32>
    %83 = arith.cmpi eq, %24, %82 : vector<8x16xi32>
    %84 = arith.mulf %31, %37 : vector<8x16xf32>
    %cst_38 = arith.constant 1.000000e+00 : f32
    %cst_39 = arith.constant 0.000000e+00 : f32
    %85 = vector.broadcast %cst_38 : f32 to vector<8x16xf32>
    %86 = vector.broadcast %cst_39 : f32 to vector<8x16xf32>
    %87 = arith.select %81, %85, %86 : vector<8x16xi1>, vector<8x16xf32>
    %cst_40 = arith.constant 0.000000e+00 : f32
    %88 = vector.broadcast %cst_40 : f32 to vector<8x16xf32>
    %89 = arith.select %81, %84, %88 : vector<8x16xi1>, vector<8x16xf32>
    %90 = arith.subf %39, %10 : vector<8x16xf32>
    %cst_41 = arith.constant 0.000000e+00 : f32
    %91 = vector.broadcast %cst_41 : f32 to vector<8x16xf32>
    %92 = arith.select %81, %90, %91 : vector<8x16xi1>, vector<8x16xf32>
    %cst_42 = arith.constant 1.000000e+00 : f32
    %cst_43 = arith.constant 0.000000e+00 : f32
    %93 = vector.broadcast %cst_42 : f32 to vector<8x16xf32>
    %94 = vector.broadcast %cst_43 : f32 to vector<8x16xf32>
    %95 = arith.select %83, %93, %94 : vector<8x16xi1>, vector<8x16xf32>
    %cst_44 = arith.constant 0.000000e+00 : f32
    %96 = vector.broadcast %cst_44 : f32 to vector<8x16xf32>
    %97 = arith.select %81, %43, %96 : vector<8x16xi1>, vector<8x16xf32>
    %c3_i32_45 = arith.constant 3 : i32
    %98 = vector.broadcast %c3_i32_45 : i32 to vector<8x16xi32>
    %99 = arith.cmpi eq, %4, %98 : vector<8x16xi32>
    %c3_i32_46 = arith.constant 3 : i32
    %100 = vector.broadcast %c3_i32_46 : i32 to vector<8x16xi32>
    %101 = arith.cmpi eq, %24, %100 : vector<8x16xi32>
    %102 = arith.mulf %33, %37 : vector<8x16xf32>
    %cst_47 = arith.constant 1.000000e+00 : f32
    %cst_48 = arith.constant 0.000000e+00 : f32
    %103 = vector.broadcast %cst_47 : f32 to vector<8x16xf32>
    %104 = vector.broadcast %cst_48 : f32 to vector<8x16xf32>
    %105 = arith.select %99, %103, %104 : vector<8x16xi1>, vector<8x16xf32>
    %cst_49 = arith.constant 0.000000e+00 : f32
    %106 = vector.broadcast %cst_49 : f32 to vector<8x16xf32>
    %107 = arith.select %99, %102, %106 : vector<8x16xi1>, vector<8x16xf32>
    %108 = arith.subf %39, %12 : vector<8x16xf32>
    %cst_50 = arith.constant 0.000000e+00 : f32
    %109 = vector.broadcast %cst_50 : f32 to vector<8x16xf32>
    %110 = arith.select %99, %108, %109 : vector<8x16xi1>, vector<8x16xf32>
    %cst_51 = arith.constant 1.000000e+00 : f32
    %cst_52 = arith.constant 0.000000e+00 : f32
    %111 = vector.broadcast %cst_51 : f32 to vector<8x16xf32>
    %112 = vector.broadcast %cst_52 : f32 to vector<8x16xf32>
    %113 = arith.select %101, %111, %112 : vector<8x16xi1>, vector<8x16xf32>
    %cst_53 = arith.constant 0.000000e+00 : f32
    %114 = vector.broadcast %cst_53 : f32 to vector<8x16xf32>
    %115 = arith.select %99, %43, %114 : vector<8x16xi1>, vector<8x16xf32>
    %116 = vector.shape_cast %51 : vector<8x16xf32> to vector<1x8x16xf32>
    %117 = vector.shape_cast %69 : vector<8x16xf32> to vector<1x8x16xf32>
    %118 = vector.shape_cast %87 : vector<8x16xf32> to vector<1x8x16xf32>
    %119 = vector.shape_cast %105 : vector<8x16xf32> to vector<1x8x16xf32>
    %120 = tpu.concatenate %116, %117, %118, %119 in 0 : vector<1x8x16xf32>, vector<1x8x16xf32>, vector<1x8x16xf32>, vector<1x8x16xf32> -> vector<4x8x16xf32>
    %121 = vector.shape_cast %48 : vector<8x16xf32> to vector<1x8x16xf32>
    %122 = vector.shape_cast %66 : vector<8x16xf32> to vector<1x8x16xf32>
    %123 = vector.shape_cast %84 : vector<8x16xf32> to vector<1x8x16xf32>
    %124 = vector.shape_cast %102 : vector<8x16xf32> to vector<1x8x16xf32>
    %125 = tpu.concatenate %121, %122, %123, %124 in 0 : vector<1x8x16xf32>, vector<1x8x16xf32>, vector<1x8x16xf32>, vector<1x8x16xf32> -> vector<4x8x16xf32>
    %126 = vector.shape_cast %53 : vector<8x16xf32> to vector<1x8x16xf32>
    %127 = vector.shape_cast %71 : vector<8x16xf32> to vector<1x8x16xf32>
    %128 = vector.shape_cast %89 : vector<8x16xf32> to vector<1x8x16xf32>
    %129 = vector.shape_cast %107 : vector<8x16xf32> to vector<1x8x16xf32>
    %130 = tpu.concatenate %126, %127, %128, %129 in 0 : vector<1x8x16xf32>, vector<1x8x16xf32>, vector<1x8x16xf32>, vector<1x8x16xf32> -> vector<4x8x16xf32>
    %131 = vector.shape_cast %56 : vector<8x16xf32> to vector<1x8x16xf32>
    %132 = vector.shape_cast %74 : vector<8x16xf32> to vector<1x8x16xf32>
    %133 = vector.shape_cast %92 : vector<8x16xf32> to vector<1x8x16xf32>
    %134 = vector.shape_cast %110 : vector<8x16xf32> to vector<1x8x16xf32>
    %135 = tpu.concatenate %131, %132, %133, %134 in 0 : vector<1x8x16xf32>, vector<1x8x16xf32>, vector<1x8x16xf32>, vector<1x8x16xf32> -> vector<4x8x16xf32>
    %136 = vector.shape_cast %59 : vector<8x16xf32> to vector<1x8x16xf32>
    %137 = vector.shape_cast %77 : vector<8x16xf32> to vector<1x8x16xf32>
    %138 = vector.shape_cast %95 : vector<8x16xf32> to vector<1x8x16xf32>
    %139 = vector.shape_cast %113 : vector<8x16xf32> to vector<1x8x16xf32>
    %140 = tpu.concatenate %136, %137, %138, %139 in 0 : vector<1x8x16xf32>, vector<1x8x16xf32>, vector<1x8x16xf32>, vector<1x8x16xf32> -> vector<4x8x16xf32>
    %141 = vector.shape_cast %61 : vector<8x16xf32> to vector<1x8x16xf32>
    %142 = vector.shape_cast %79 : vector<8x16xf32> to vector<1x8x16xf32>
    %143 = vector.shape_cast %97 : vector<8x16xf32> to vector<1x8x16xf32>
    %144 = vector.shape_cast %115 : vector<8x16xf32> to vector<1x8x16xf32>
    %145 = tpu.concatenate %141, %142, %143, %144 in 0 : vector<1x8x16xf32>, vector<1x8x16xf32>, vector<1x8x16xf32>, vector<1x8x16xf32> -> vector<4x8x16xf32>
    %146 = vector.shape_cast %120 : vector<4x8x16xf32> to vector<1x4x8x16xf32>
    %147 = vector.shape_cast %125 : vector<4x8x16xf32> to vector<1x4x8x16xf32>
    %148 = vector.shape_cast %130 : vector<4x8x16xf32> to vector<1x4x8x16xf32>
    %149 = vector.shape_cast %135 : vector<4x8x16xf32> to vector<1x4x8x16xf32>
    %150 = vector.shape_cast %140 : vector<4x8x16xf32> to vector<1x4x8x16xf32>
    %151 = vector.shape_cast %145 : vector<4x8x16xf32> to vector<1x4x8x16xf32>
    %152 = tpu.concatenate %146, %147, %148, %149, %150, %151 in 0 : vector<1x4x8x16xf32>, vector<1x4x8x16xf32>, vector<1x4x8x16xf32>, vector<1x4x8x16xf32>, vector<1x4x8x16xf32>, vector<1x4x8x16xf32> -> vector<6x4x8x16xf32>
    %c0_54 = arith.constant 0 : index
    %c0_55 = arith.constant 0 : index
    %c0_56 = arith.constant 0 : index
    %c0_57 = arith.constant 0 : index
    %153 = vector.load %arg6[%c0_54, %c0_55, %c0_56, %c0_57] : memref<6x4x8x16xf32, #tpu.memory_space<vmem>>, vector<6x4x8x16xf32>
    %154 = arith.addf %153, %152 : vector<6x4x8x16xf32>
    %c0_58 = arith.constant 0 : index
    %c0_59 = arith.constant 0 : index
    %c0_60 = arith.constant 0 : index
    %c0_61 = arith.constant 0 : index
    %155 = vector.load %arg6[%c0_58, %c0_59, %c0_60, %c0_61] : memref<6x4x8x16xf32, #tpu.memory_space<vmem>>, vector<6x4x8x16xf32>
    tpu.vector_store %arg6[%c0_58, %c0_59, %c0_60, %c0_61], %154 {strides = array<i32>} : memref<6x4x8x16xf32, #tpu.memory_space<vmem>>, vector<6x4x8x16xf32>,
    %c1_i32_62 = arith.constant 1 : i32
    %156 = arith.cmpi eq, %arg2, %c1_i32_62 : i32
    %157 = arith.extui %156 : i1 to i32
    %c0_i32_63 = arith.constant 0 : i32
    %158 = arith.cmpi ne, %157, %c0_i32_63 : i32
    scf.if %158 {
      %c0_64 = arith.constant 0 : index
      %c0_65 = arith.constant 0 : index
      %c0_66 = arith.constant 0 : index
      %c0_67 = arith.constant 0 : index
      %159 = vector.load %arg6[%c0_64, %c0_65, %c0_66, %c0_67] : memref<6x4x8x16xf32, #tpu.memory_space<vmem>>, vector<6x4x8x16xf32>
      %cst_68 = arith.constant dense<0.000000e+00> : vector<6x4x16xf32>
      %160 = vector.multi_reduction <add>, %159, %cst_68 [2] : vector<6x4x8x16xf32> to vector<6x4x16xf32>
      %c0_69 = arith.constant 0 : index
      %c0_70 = arith.constant 0 : index
      %c0_71 = arith.constant 0 : index
      %c0_72 = arith.constant 0 : index
      %161 = vector.load %arg5[%c0_69, %c0_70, %c0_71, %c0_72] : memref<1x6x4x16xf32, #tpu.memory_space<vmem>>, vector<1x6x4x16xf32>
      %162 = vector.shape_cast %161 : vector<1x6x4x16xf32> to vector<6x4x16xf32>
      %163 = vector.shape_cast %160 : vector<6x4x16xf32> to vector<1x6x4x16xf32>
      tpu.vector_store %arg5[%c0_69, %c0_70, %c0_71, %c0_72], %163 {strides = array<i32>} : memref<1x6x4x16xf32, #tpu.memory_space<vmem>>, vector<1x6x4x16xf32>,
    } else {
    }
    return
  }
  func.func @transform_0(%arg0: i32, %arg1: i32, %arg2: i32) -> (i32, i32, i32, i32) {
    %c0_i32 = arith.constant 0 : i32
    %c0_i32_0 = arith.constant 0 : i32
    return %arg0, %c0_i32, %arg2, %arg1 : i32, i32, i32, i32
  }
  func.func @transform_1(%arg0: i32, %arg1: i32, %arg2: i32) -> (i32, i32, i32) {
    %c0_i32 = arith.constant 0 : i32
    return %arg0, %arg2, %arg1 : i32, i32, i32
  }
  func.func @transform_2(%arg0: i32, %arg1: i32, %arg2: i32) -> (i32, i32, i32, i32) {
    %c0_i32 = arith.constant 0 : i32
    %c0_i32_0 = arith.constant 0 : i32
    %c0_i32_1 = arith.constant 0 : i32
    return %arg0, %c0_i32, %c0_i32_0, %arg1 : i32, i32, i32, i32
  }
}

</mosaic_0001>

<llo_original>
// kernel: tpu_custom_call.1
$region0: #{tpu_custom_call.1}
  #allocation0 [shape = 'u32[]', space=smem, size = 0x4, offset = 0x4, fixed_abs, tag = 'smem constant byte address 0x4 - core index']
  #allocation1 [shape = 'u32[72,128]{1,0:T(1,128)}', space=vmem, size = 0x9000, scoped, tag = 'internal scratch']
  #allocation2 [shape = 'f32[6,4,8,16]{3,2,1,0:T(8,128)}', space=vmem, size = 0x18000, scoped, tag = 'scratch operand']
  %s0 = inlined_call_operand.hbm [shape: f32[2,4,16,16], index: 0, kind: input, shape index: {}]
  %s1 = inlined_call_operand.hbm [shape: s32[2,16,16], index: 1, kind: input, shape index: {}]
  %s2 = inlined_call_operand.hbm [shape: f32[2,6,4,16], index: 2, kind: output, shape index: {}]
  %s3 = sld [smem:[#allocation0]]
  $region57: #{tpu_custom_call.1} parent=0
    _
  %s5 = ssub.s32 1, %s3
  %s6 = scalar_select 0, %s5, %s3
  $region1: #{tpu_custom_call.1} parent=0
    #allocation3 [shape = 'u8[32768]{0}', space=vmem, size = 0x8000, scoped, tag = 'input window, operand 0']
    #allocation4 [shape = 's32[2]{0}', space=sflag, size = 0x8, scoped, tag = 'scoped memory for tpu_custom_call.1']
    #allocation5 [shape = 's32[2]{0}', space=sflag, size = 0x8, scoped, tag = 'scoped memory for tpu_custom_call.1']
    #allocation6 [shape = 'u8[8192]{0}', space=vmem, size = 0x2000, scoped, tag = 'input window, operand 1']
    #allocation7 [shape = 's32[2]{0}', space=sflag, size = 0x8, scoped, tag = 'scoped memory for tpu_custom_call.1']
    #allocation8 [shape = 'u8[24576]{0}', space=vmem, size = 0x6000, scoped, tag = 'output window, operand 0']
    %7 = vsyncpa [#allocation4], 0
    %s8 = scalar_lea.sflag [#allocation4], 1
    %9 = vsyncpa %s8, 0
    %10 = vsyncpa [#allocation7], 0
    %s11 = scalar_lea.sflag [#allocation7], 1
    %12 = vsyncpa %s11, 0
    %13 = vsyncpa [#allocation5], 0
    %s14 = scalar_lea.sflag [#allocation5], 1
    %15 = vsyncpa %s14, 0
    loop: start=0, step=1, limit=6
    $region2: #{tpu_custom_call.1} parent=1 // loop_pre_header
      _
    $region3: #{tpu_custom_call.1} parent=1 // loop_header
      %s17 = sphi 0, %s21
      %p18 = scmp.ge.s32.totalorder %s17, 6
      %s24 = sphi 0, %s43
      %s25 = sphi 0, %s39
      %s26 = sphi 0, %s35
      %s27 = sphi 0, %s24
      %s28 = sphi 0, %s25
      %s29 = sphi 0, %s26
      %s30 = sphi 0, %s27
      %s31 = sphi 0, %s28
      %s32 = sphi 0, %s29
      %s50 = sphi 0, %s52
      %s53 = sphi 0, %s50
      %s54 = sphi 0, %s53
      %s70 = sphi 0, %s54
      %s80 = sphi 0, %s82
      %s83 = sphi 0, %s80
      %s84 = sphi 0, %s83
      %s100 = sphi 0, %s84
      %s108 = sphi 0, %s110
      %s111 = sphi 0, %s108
      %s112 = sphi 0, %s111
      %s128 = sphi 0, %s112
    $region4: #{tpu_custom_call.1} parent=1 // loop_header_branch
      %20 = sbr.rel (%p18) target = $region8
    $region5: #{tpu_custom_call.1} parent=1 // loop_body
      %s22 = ssub.s32 %s17, 1
      %s23 = ssub.s32 %s17, 2
      %s33 = sadd.s32 1, %s26
      %p34 = scmp.ge.s32.totalorder %s33, 2
      %s35 = scalar_select %p34, 0, %s33
      %s36 = sadd.s32 1, %s25
      %s37 = scalar_select %p34, %s36, %s25
      %p38 = scmp.ge.s32.totalorder %s37, 1
      %s39 = scalar_select %p38, 0, %s37
      %s40 = sadd.s32 1, %s24
      %s41 = scalar_select %p38, %s40, %s24
      %p42 = scmp.ge.s32.totalorder %s41, 2
      %s43 = scalar_select %p42, 0, %s41
      %s44 = ssub.s32 %s24, %s43
      %s45 = ssub.s32 %s26, %s35
      %s46 = sor.u32 %s44, %s45
      %s47 = ssub.s32 %s25, %s39
      %s48 = sor.u32 %s46, %s47
      %p49 = scmp.eq.s32.totalorder %s48, 0
      %s51 = sadd.s32 %s50, 1
      %s52 = scalar_select %p49, %s50, %s51
      %p55 = pneg %p49
      %p56 = scmp.eq.s32.totalorder %s17, 3
      %p57 = por %p55, %p56
      %p58 = scmp.ne.s32.totalorder %s50, %s53
      %p59 = scmp.eq.s32.totalorder %s17, 0
      %p60 = por %p58, %p59
      %p61 = scmp.ne.s32.totalorder %s50, %s53
      %p62 = scmp.eq.s32.totalorder %s22, 3
      %p63 = por %p61, %p62
      %p64 = scmp.ne.s32.totalorder %s53, %s54
      %p65 = scmp.eq.s32.totalorder %s22, 0
      %p66 = por %p64, %p65
      %p67 = scmp.ne.s32.totalorder %s53, %s54
      %p68 = scmp.eq.s32.totalorder %s23, 3
      %p69 = por %p67, %p68
      %p71 = scmp.ne.s32.totalorder %s54, %s70
      %p72 = scmp.eq.s32.totalorder %s23, 0
      %p73 = por %p71, %p72
      %s74 = ssub.s32 %s24, %s43
      %s75 = ssub.s32 %s26, %s35
      %s76 = sor.u32 %s74, %s75
      %s77 = ssub.s32 %s25, %s39
      %s78 = sor.u32 %s76, %s77
      %p79 = scmp.eq.s32.totalorder %s78, 0
      %s81 = sadd.s32 %s80, 1
      %s82 = scalar_select %p79, %s80, %s81
      %p85 = pneg %p79
      %p86 = scmp.eq.s32.totalorder %s17, 3
      %p87 = por %p85, %p86
      %p88 = scmp.ne.s32.totalorder %s80, %s83
      %p89 = scmp.eq.s32.totalorder %s17, 0
      %p90 = por %p88, %p89
      %p91 = scmp.ne.s32.totalorder %s80, %s83
      %p92 = scmp.eq.s32.totalorder %s22, 3
      %p93 = por %p91, %p92
      %p94 = scmp.ne.s32.totalorder %s83, %s84
      %p95 = scmp.eq.s32.totalorder %s22, 0
      %p96 = por %p94, %p95
      %p97 = scmp.ne.s32.totalorder %s83, %s84
      %p98 = scmp.eq.s32.totalorder %s23, 3
      %p99 = por %p97, %p98
      %p101 = scmp.ne.s32.totalorder %s84, %s100
      %p102 = scmp.eq.s32.totalorder %s23, 0
      %p103 = por %p101, %p102
      %s104 = ssub.s32 %s24, %s43
      %s105 = ssub.s32 %s25, %s39
      %s106 = sor.u32 %s104, %s105
      %p107 = scmp.eq.s32.totalorder %s106, 0
      %s109 = sadd.s32 %s108, 1
      %s110 = scalar_select %p107, %s108, %s109
      %p113 = pneg %p107
      %p114 = scmp.eq.s32.totalorder %s17, 3
      %p115 = por %p113, %p114
      %p116 = scmp.ne.s32.totalorder %s108, %s111
      %p117 = scmp.eq.s32.totalorder %s17, 0
      %p118 = por %p116, %p117
      %p119 = scmp.ne.s32.totalorder %s108, %s111
      %p120 = scmp.eq.s32.totalorder %s22, 3
      %p121 = por %p119, %p120
      %p122 = scmp.ne.s32.totalorder %s111, %s112
      %p123 = scmp.eq.s32.totalorder %s22, 0
      %p124 = por %p122, %p123
      %p125 = scmp.ne.s32.totalorder %s111, %s112
      %p126 = scmp.eq.s32.totalorder %s23, 3
      %p127 = por %p125, %p126
      %p129 = scmp.ne.s32.totalorder %s112, %s128
      %p130 = scmp.eq.s32.totalorder %s23, 0
      %p131 = por %p129, %p130
      %p132 = scmp.le.s32.totalorder 1, %s17
      %p133 = scmp.lt.s32.totalorder %s17, 5
      %p134 = pnand %p132, %p133
      %p135 = pneg %p134
      // Predicated region
      $region9: #{tpu_custom_call.1} parent=5 // pred_check
        _
      $region10: #{tpu_custom_call.1} parent=5 // pred_check_branch
        %137 = sbr.rel (%p134) target = $region12
      $region11: #{tpu_custom_call.1} parent=5 // pred_region
        %s138 = ssub.s32 %s17, 1
      $region12: #{tpu_custom_call.1} parent=5 // pred_fallthru
        _
      %p139 = scmp.lt.s32.totalorder %s17, 4
      // Predicated region
      $region13: #{tpu_custom_call.1} parent=5 // pred_check
        %p140 = pneg %p139
      $region14: #{tpu_custom_call.1} parent=5 // pred_check_branch
        %142 = sbr.rel (%p140) target = $region16
      $region15: #{tpu_custom_call.1} parent=5 // pred_region
        // Predicated region
        $region17: #{tpu_custom_call.1} parent=15 // pred_check
          %p143 = pneg %p60
        $region18: #{tpu_custom_call.1} parent=15 // pred_check_branch
          %145 = sbr.rel (%p143) target = $region20
        $region19: #{tpu_custom_call.1} parent=15 // pred_region
          %s146 = sand.u32 %s50, 1
          %s147 = scalar_lea.sflag [#allocation4], %s146
          %s148 = sand.u32 %s50, 1
          %s149 = smul.addr %s148, 32
          %s150 = scalar_lea.vmem [#allocation3], %s149
          %152 = vsyncadd %s147, 0
          %s153 = sadd.s32 %s25, %s26
          %s154 = smul.addr %s24, 8
          %s155 = sadd.s32 %s153, %s154
          %s156 = smul.addr %s155, 8
          %s157 = scalar_lea.hbm %s0, %s156
          %s158 = sshll.u32 %s157, 4
          %s159 = int_to_ptr.hbm [resolvable:$true] %s158
          %s160 = sshll.u32 %s150, 4
          %s161 = int_to_ptr.vmem [resolvable:$true] %s160
          %166 = dma.hbm_to_vmem [thread:$0]  %s159, 512, %s161, %s147, 256, 128, 8
        $region20: #{tpu_custom_call.1} parent=15 // pred_fallthru
          _
        // Predicated region
        $region21: #{tpu_custom_call.1} parent=15 // pred_check
          %p167 = pneg %p90
        $region22: #{tpu_custom_call.1} parent=15 // pred_check_branch
          %169 = sbr.rel (%p167) target = $region24
        $region23: #{tpu_custom_call.1} parent=15 // pred_region
          %s170 = sand.u32 %s80, 1
          %s171 = scalar_lea.sflag [#allocation7], %s170
          %s172 = sand.u32 %s80, 1
          %s173 = smul.addr %s172, 8
          %s174 = scalar_lea.vmem [#allocation6], %s173
          %176 = vsyncadd %s171, 0
          %s177 = sadd.s32 %s25, %s26
          %s178 = smul.addr %s24, 2
          %s179 = sadd.s32 %s177, %s178
          %s180 = smul.addr %s179, 8
          %s181 = scalar_lea.hbm %s1, %s180
          %s183 = sshll.u32 %s181, 4
          %s184 = int_to_ptr.hbm [resolvable:$true] %s183
          %s185 = sshll.u32 %s174, 4
          %s186 = int_to_ptr.vmem [resolvable:$true] %s185
          %188 = dma.hbm_to_vmem [thread:$0]  %s184, 128, %s186, %s171
        $region24: #{tpu_custom_call.1} parent=15 // pred_fallthru
          _
      $region16: #{tpu_custom_call.1} parent=5 // pred_fallthru
        _
      %p189 = scmp.le.s32.totalorder 1, %s17
      %p190 = scmp.lt.s32.totalorder %s17, 5
      %p191 = pnand %p189, %p190
      %p192 = pneg %p191
      // Predicated region
      $region25: #{tpu_custom_call.1} parent=5 // pred_check
        _
      $region26: #{tpu_custom_call.1} parent=5 // pred_check_branch
        %194 = sbr.rel (%p191) target = $region28
      $region27: #{tpu_custom_call.1} parent=5 // pred_region
        %s195 = ssub.s32 %s17, 1
        %s196 = sand.u32 %s53, 1
        %s197 = scalar_lea.sflag [#allocation4], %s196
        %s198 = sand.u32 %s53, 1
        %s199 = smul.addr %s198, 32
        %s200 = scalar_lea.vmem [#allocation3], %s199
        // Predicated region
        $region29: #{tpu_custom_call.1} parent=27 // pred_check
          %p201 = pneg %p66
        $region30: #{tpu_custom_call.1} parent=27 // pred_check_branch
          %203 = sbr.rel (%p201) target = $region32
        $region31: #{tpu_custom_call.1} parent=27 // pred_region
          %205 = dma.done %s197, 512
        $region32: #{tpu_custom_call.1} parent=27 // pred_fallthru
          _
        %s206 = sand.u32 %s83, 1
        %s207 = scalar_lea.sflag [#allocation7], %s206
        %s208 = sand.u32 %s83, 1
        %s209 = smul.addr %s208, 8
        %s210 = scalar_lea.vmem [#allocation6], %s209
        // Predicated region
        $region33: #{tpu_custom_call.1} parent=27 // pred_check
          %p211 = pneg %p96
        $region34: #{tpu_custom_call.1} parent=27 // pred_check_branch
          %213 = sbr.rel (%p211) target = $region36
        $region35: #{tpu_custom_call.1} parent=27 // pred_region
          %215 = dma.done %s207, 128
        $region36: #{tpu_custom_call.1} parent=27 // pred_fallthru
          _
        %s216 = sand.u32 %s53, 1
        %s217 = scalar_lea.sflag [#allocation4], %s216
        %s218 = sand.u32 %s53, 1
        %s219 = smul.addr %s218, 32
        %s220 = scalar_lea.vmem [#allocation3], %s219
        %p221 = pneg %p66
        %p222 = pneg %p63
        %s223 = sand.u32 %s83, 1
        %s224 = scalar_lea.sflag [#allocation7], %s223
        %s225 = sand.u32 %s83, 1
        %s226 = smul.addr %s225, 8
        %s227 = scalar_lea.vmem [#allocation6], %s226
        %p228 = pneg %p96
        %p229 = pneg %p93
        %p230 = pneg %p124
        %p231 = pneg %p121
        %s232 = sand.u32 %s111, 1
        %s233 = scalar_lea.sflag [#allocation5], %s232
        %s234 = sand.u32 %s111, 1
        %s235 = smul.addr %s234, 24
        %s236 = scalar_lea.vmem [#allocation8], %s235
        %p237 = scmp.eq.s32.totalorder %s29, 0
        // Predicated region
        $region37: #{tpu_custom_call.1} parent=27 // pred_check
          %p238 = pneg %p237
        $region38: #{tpu_custom_call.1} parent=27 // pred_check_branch
          %240 = sbr.rel (%p238) target = $region40
        $region39: #{tpu_custom_call.1} parent=27 // pred_region
          %vm241 = vcmask 130048
          %242 = vst.msk [vmem:[#allocation2] sm:$0xff] %vm241, 0.0
          %243 = vst.msk [vmem:[#allocation2 + $0x8] sm:$0xff] %vm241, 0.0
          %244 = vst.msk [vmem:[#allocation2 + $0x10] sm:$0xff] %vm241, 0.0
          %245 = vst.msk [vmem:[#allocation2 + $0x18] sm:$0xff] %vm241, 0.0
          %246 = vst.msk [vmem:[#allocation2 + $0x20] sm:$0xff] %vm241, 0.0
          %247 = vst.msk [vmem:[#allocation2 + $0x28] sm:$0xff] %vm241, 0.0
          %248 = vst.msk [vmem:[#allocation2 + $0x30] sm:$0xff] %vm241, 0.0
          %249 = vst.msk [vmem:[#allocation2 + $0x38] sm:$0xff] %vm241, 0.0
          %250 = vst.msk [vmem:[#allocation2 + $0x40] sm:$0xff] %vm241, 0.0
          %251 = vst.msk [vmem:[#allocation2 + $0x48] sm:$0xff] %vm241, 0.0
          %252 = vst.msk [vmem:[#allocation2 + $0x50] sm:$0xff] %vm241, 0.0
          %253 = vst.msk [vmem:[#allocation2 + $0x58] sm:$0xff] %vm241, 0.0
          %254 = vst.msk [vmem:[#allocation2 + $0x60] sm:$0xff] %vm241, 0.0
          %255 = vst.msk [vmem:[#allocation2 + $0x68] sm:$0xff] %vm241, 0.0
          %256 = vst.msk [vmem:[#allocation2 + $0x70] sm:$0xff] %vm241, 0.0
          %257 = vst.msk [vmem:[#allocation2 + $0x78] sm:$0xff] %vm241, 0.0
          %258 = vst.msk [vmem:[#allocation2 + $0x80] sm:$0xff] %vm241, 0.0
          %259 = vst.msk [vmem:[#allocation2 + $0x88] sm:$0xff] %vm241, 0.0
          %260 = vst.msk [vmem:[#allocation2 + $0x90] sm:$0xff] %vm241, 0.0
          %261 = vst.msk [vmem:[#allocation2 + $0x98] sm:$0xff] %vm241, 0.0
          %262 = vst.msk [vmem:[#allocation2 + $0xa0] sm:$0xff] %vm241, 0.0
          %263 = vst.msk [vmem:[#allocation2 + $0xa8] sm:$0xff] %vm241, 0.0
          %264 = vst.msk [vmem:[#allocation2 + $0xb0] sm:$0xff] %vm241, 0.0
          %265 = vst.msk [vmem:[#allocation2 + $0xb8] sm:$0xff] %vm241, 0.0
        $region40: #{tpu_custom_call.1} parent=27 // pred_fallthru
          _
        %v266 = vld [vmem:[%s210] sm:$0xff]
        %v267 = vld [vmem:[%s200] sm:$0xff]
        %s268 = scalar_lea.vmem %s200, 8 [#allocation3]
        %v269 = vld [vmem:[%s268] sm:$0xff]
        %s270 = scalar_lea.vmem %s200, 16 [#allocation3]
        %v271 = vld [vmem:[%s270] sm:$0xff]
        %s272 = scalar_lea.vmem %s200, 24 [#allocation3]
        %v273 = vld [vmem:[%s272] sm:$0xff]
        %vm274 = vcmp.gt.f32.partialorder %v269, %v267
        %v275 = vsel %vm274, 1, 0
        %v276 = vsel %vm274, %v269, %v267
        %vm277 = vcmp.gt.f32.partialorder %v271, %v276
        %v278 = vsel %vm277, 2, %v275
        %v279 = vsel %vm277, %v271, %v276
        %vm280 = vcmp.gt.f32.partialorder %v273, %v279
        %v281 = vsel %vm280, 3, %v278
        %v282 = vsel %vm280, %v273, %v279
        %v283 = vsub.f32 %v267, %v282
        %v284 = vmul.f32 %v283, 1.442695
        %v285 = vpow.pop %v284
        %v286 = vsub.f32 %v269, %v282
        %v287 = vmul.f32 %v286, 1.442695
        %v288 = vpow.pop %v287
        %v289 = vsub.f32 %v271, %v282
        %v290 = vmul.f32 %v289, 1.442695
        %v291 = vpow.pop %v290
        %v292 = vsub.f32 %v273, %v282
        %v293 = vmul.f32 %v292, 1.442695
        %v294 = vpow.pop %v293
        %v295 = vadd.f32 %v285, %v288
        %v296 = vadd.f32 %v295, %v291
        %v297 = vadd.f32 %v296, %v294
        %v298 = vrcp.pop %v297
        %v299 = vlog2.pop %v297
        %v300 = vmul.f32 %v299, 0.6931472
        %v301 = vadd.f32 %v282, %v300
        %vm302 = vcmp.eq.s32.totalorder %v281, %v266
        %v303 = vsel %vm302, 1.0, 0.0
        %vm304 = vcmp.eq.s32.totalorder %v266, 0
        %vm305 = vcmp.eq.s32.totalorder %v281, 0
        %v306 = vmul.f32 %v285, %v298
        %v307 = vsel %vm304, 1.0, 0.0
        %v308 = vsel %vm304, %v306, 0.0
        %v309 = vsub.f32 %v301, %v267
        %v310 = vsel %vm304, %v309, 0.0
        %v311 = vsel %vm305, 1.0, 0.0
        %v312 = vsel %vm304, %v303, 0.0
        %vm313 = vcmp.eq.s32.totalorder %v266, 1
        %vm314 = vcmp.eq.s32.totalorder %v281, 1
        %v315 = vmul.f32 %v288, %v298
        %v316 = vsel %vm313, 1.0, 0.0
        %v317 = vsel %vm313, %v315, 0.0
        %v318 = vsub.f32 %v301, %v269
        %v319 = vsel %vm313, %v318, 0.0
        %v320 = vsel %vm314, 1.0, 0.0
        %v321 = vsel %vm313, %v303, 0.0
        %vm322 = vcmp.eq.s32.totalorder %v266, 2
        %vm323 = vcmp.eq.s32.totalorder %v281, 2
        %v324 = vmul.f32 %v291, %v298
        %v325 = vsel %vm322, 1.0, 0.0
        %v326 = vsel %vm322, %v324, 0.0
        %v327 = vsub.f32 %v301, %v271
        %v328 = vsel %vm322, %v327, 0.0
        %v329 = vsel %vm323, 1.0, 0.0
        %v330 = vsel %vm322, %v303, 0.0
        %vm331 = vcmp.eq.s32.totalorder %v266, 3
        %vm332 = vcmp.eq.s32.totalorder %v281, 3
        %v333 = vmul.f32 %v294, %v298
        %v334 = vsel %vm331, 1.0, 0.0
        %v335 = vsel %vm331, %v333, 0.0
        %v336 = vsub.f32 %v301, %v273
        %v337 = vsel %vm331, %v336, 0.0
        %v338 = vsel %vm332, 1.0, 0.0
        %v339 = vsel %vm331, %v303, 0.0
        %v340 = vld [vmem:[#allocation2] sm:$0xff]
        %v341 = vld [vmem:[#allocation2 + $0x8] sm:$0xff]
        %v342 = vld [vmem:[#allocation2 + $0x10] sm:$0xff]
        %v343 = vld [vmem:[#allocation2 + $0x18] sm:$0xff]
        %v344 = vld [vmem:[#allocation2 + $0x20] sm:$0xff]
        %v345 = vld [vmem:[#allocation2 + $0x28] sm:$0xff]
        %v346 = vld [vmem:[#allocation2 + $0x30] sm:$0xff]
        %v347 = vld [vmem:[#allocation2 + $0x38] sm:$0xff]
        %v348 = vld [vmem:[#allocation2 + $0x40] sm:$0xff]
        %v349 = vld [vmem:[#allocation2 + $0x48] sm:$0xff]
        %v350 = vld [vmem:[#allocation2 + $0x50] sm:$0xff]
        %v351 = vld [vmem:[#allocation2 + $0x58] sm:$0xff]
        %v352 = vld [vmem:[#allocation2 + $0x60] sm:$0xff]
        %v353 = vld [vmem:[#allocation2 + $0x68] sm:$0xff]
        %v354 = vld [vmem:[#allocation2 + $0x70] sm:$0xff]
        %v355 = vld [vmem:[#allocation2 + $0x78] sm:$0xff]
        %v356 = vld [vmem:[#allocation2 + $0x80] sm:$0xff]
        %v357 = vld [vmem:[#allocation2 + $0x88] sm:$0xff]
        %v358 = vld [vmem:[#allocation2 + $0x90] sm:$0xff]
        %v359 = vld [vmem:[#allocation2 + $0x98] sm:$0xff]
        %v360 = vld [vmem:[#allocation2 + $0xa0] sm:$0xff]
        %v361 = vld [vmem:[#allocation2 + $0xa8] sm:$0xff]
        %v362 = vld [vmem:[#allocation2 + $0xb0] sm:$0xff]
        %v363 = vld [vmem:[#allocation2 + $0xb8] sm:$0xff]
        %v364 = vadd.f32 %v340, %v307
        %v365 = vadd.f32 %v341, %v316
        %v366 = vadd.f32 %v342, %v325
        %v367 = vadd.f32 %v343, %v334
        %v368 = vadd.f32 %v344, %v306
        %v369 = vadd.f32 %v345, %v315
        %v370 = vadd.f32 %v346, %v324
        %v371 = vadd.f32 %v347, %v333
        %v372 = vadd.f32 %v348, %v308
        %v373 = vadd.f32 %v349, %v317
        %v374 = vadd.f32 %v350, %v326
        %v375 = vadd.f32 %v351, %v335
        %v376 = vadd.f32 %v352, %v310
        %v377 = vadd.f32 %v353, %v319
        %v378 = vadd.f32 %v354, %v328
        %v379 = vadd.f32 %v355, %v337
        %v380 = vadd.f32 %v356, %v311
        %v381 = vadd.f32 %v357, %v320
        %v382 = vadd.f32 %v358, %v329
        %v383 = vadd.f32 %v359, %v338
        %v384 = vadd.f32 %v360, %v312
        %v385 = vadd.f32 %v361, %v321
        %v386 = vadd.f32 %v362, %v330
        %v387 = vadd.f32 %v363, %v339
        %vm388 = vcmask 130048
        %389 = vst.msk [vmem:[#allocation2] sm:$0xff] %vm388, %v364
        %390 = vst.msk [vmem:[#allocation2 + $0x8] sm:$0xff] %vm388, %v365
        %391 = vst.msk [vmem:[#allocation2 + $0x10] sm:$0xff] %vm388, %v366
        %392 = vst.msk [vmem:[#allocation2 + $0x18] sm:$0xff] %vm388, %v367
        %393 = vst.msk [vmem:[#allocation2 + $0x20] sm:$0xff] %vm388, %v368
        %394 = vst.msk [vmem:[#allocation2 + $0x28] sm:$0xff] %vm388, %v369
        %395 = vst.msk [vmem:[#allocation2 + $0x30] sm:$0xff] %vm388, %v370
        %396 = vst.msk [vmem:[#allocation2 + $0x38] sm:$0xff] %vm388, %v371
        %397 = vst.msk [vmem:[#allocation2 + $0x40] sm:$0xff] %vm388, %v372
        %398 = vst.msk [vmem:[#allocation2 + $0x48] sm:$0xff] %vm388, %v373
        %399 = vst.msk [vmem:[#allocation2 + $0x50] sm:$0xff] %vm388, %v374
        %400 = vst.msk [vmem:[#allocation2 + $0x58] sm:$0xff] %vm388, %v375
        %401 = vst.msk [vmem:[#allocation2 + $0x60] sm:$0xff] %vm388, %v376
        %402 = vst.msk [vmem:[#allocation2 + $0x68] sm:$0xff] %vm388, %v377
        %403 = vst.msk [vmem:[#allocation2 + $0x70] sm:$0xff] %vm388, %v378
        %404 = vst.msk [vmem:[#allocation2 + $0x78] sm:$0xff] %vm388, %v379
        %405 = vst.msk [vmem:[#allocation2 + $0x80] sm:$0xff] %vm388, %v380
        %406 = vst.msk [vmem:[#allocation2 + $0x88] sm:$0xff] %vm388, %v381
        %407 = vst.msk [vmem:[#allocation2 + $0x90] sm:$0xff] %vm388, %v382
        %408 = vst.msk [vmem:[#allocation2 + $0x98] sm:$0xff] %vm388, %v383
        %409 = vst.msk [vmem:[#allocation2 + $0xa0] sm:$0xff] %vm388, %v384
        %410 = vst.msk [vmem:[#allocation2 + $0xa8] sm:$0xff] %vm388, %v385
        %411 = vst.msk [vmem:[#allocation2 + $0xb0] sm:$0xff] %vm388, %v386
        %412 = vst.msk [vmem:[#allocation2 + $0xb8] sm:$0xff] %vm388, %v387
        %p413 = scmp.eq.s32.totalorder %s29, 1
        // Predicated region
        $region41: #{tpu_custom_call.1} parent=27 // pred_check
          %p414 = pneg %p413
        $region42: #{tpu_custom_call.1} parent=27 // pred_check_branch
          %416 = sbr.rel (%p414) target = $region44
        $region43: #{tpu_custom_call.1} parent=27 // pred_region
          %v417 = vld [vmem:[#allocation2] sm:$0xff]
          %v418 = vld [vmem:[#allocation2 + $0x8] sm:$0xff]
          %v419 = vld [vmem:[#allocation2 + $0x10] sm:$0xff]
          %v420 = vld [vmem:[#allocation2 + $0x18] sm:$0xff]
          %v421 = vld [vmem:[#allocation2 + $0x20] sm:$0xff]
          %v422 = vld [vmem:[#allocation2 + $0x28] sm:$0xff]
          %v423 = vld [vmem:[#allocation2 + $0x30] sm:$0xff]
          %v424 = vld [vmem:[#allocation2 + $0x38] sm:$0xff]
          %v425 = vld [vmem:[#allocation2 + $0x40] sm:$0xff]
          %v426 = vld [vmem:[#allocation2 + $0x48] sm:$0xff]
          %v427 = vld [vmem:[#allocation2 + $0x50] sm:$0xff]
          %v428 = vld [vmem:[#allocation2 + $0x58] sm:$0xff]
          %v429 = vld [vmem:[#allocation2 + $0x60] sm:$0xff]
          %v430 = vld [vmem:[#allocation2 + $0x68] sm:$0xff]
          %v431 = vld [vmem:[#allocation2 + $0x70] sm:$0xff]
          %v432 = vld [vmem:[#allocation2 + $0x78] sm:$0xff]
          %v433 = vld [vmem:[#allocation2 + $0x80] sm:$0xff]
          %v434 = vld [vmem:[#allocation2 + $0x88] sm:$0xff]
          %v435 = vld [vmem:[#allocation2 + $0x90] sm:$0xff]
          %v436 = vld [vmem:[#allocation2 + $0x98] sm:$0xff]
          %v437 = vld [vmem:[#allocation2 + $0xa0] sm:$0xff]
          %v438 = vld [vmem:[#allocation2 + $0xa8] sm:$0xff]
          %v439 = vld [vmem:[#allocation2 + $0xb0] sm:$0xff]
          %v440 = vld [vmem:[#allocation2 + $0xb8] sm:$0xff]
          %v441 = vsel %vm388, %v417, 0.0
          %v442 = vrot.slane %v441, 4
          %v443 = vadd.f32 %v441, %v442
          %v444 = vrot.slane %v443, 2
          %v445 = vadd.f32 %v443, %v444
          %v446 = vrot.slane %v445, 1
          %v447 = vadd.f32 %v445, %v446
          %v448 = vsel %vm388, %v418, 0.0
          %v449 = vrot.slane %v448, 4
          %v450 = vadd.f32 %v448, %v449
          %v451 = vrot.slane %v450, 2
          %v452 = vadd.f32 %v450, %v451
          %v453 = vrot.slane %v452, 1
          %v454 = vadd.f32 %v452, %v453
          %v455 = vsel %vm388, %v419, 0.0
          %v456 = vrot.slane %v455, 4
          %v457 = vadd.f32 %v455, %v456
          %v458 = vrot.slane %v457, 2
          %v459 = vadd.f32 %v457, %v458
          %v460 = vrot.slane %v459, 1
          %v461 = vadd.f32 %v459, %v460
          %v462 = vsel %vm388, %v420, 0.0
          %v463 = vrot.slane %v462, 4
          %v464 = vadd.f32 %v462, %v463
          %v465 = vrot.slane %v464, 2
          %v466 = vadd.f32 %v464, %v465
          %v467 = vrot.slane %v466, 1
          %v468 = vadd.f32 %v466, %v467
          %v469 = vsel %vm388, %v421, 0.0
          %v470 = vrot.slane %v469, 4
          %v471 = vadd.f32 %v469, %v470
          %v472 = vrot.slane %v471, 2
          %v473 = vadd.f32 %v471, %v472
          %v474 = vrot.slane %v473, 1
          %v475 = vadd.f32 %v473, %v474
          %v476 = vsel %vm388, %v422, 0.0
          %v477 = vrot.slane %v476, 4
          %v478 = vadd.f32 %v476, %v477
          %v479 = vrot.slane %v478, 2
          %v480 = vadd.f32 %v478, %v479
          %v481 = vrot.slane %v480, 1
          %v482 = vadd.f32 %v480, %v481
          %v483 = vsel %vm388, %v423, 0.0
          %v484 = vrot.slane %v483, 4
          %v485 = vadd.f32 %v483, %v484
          %v486 = vrot.slane %v485, 2
          %v487 = vadd.f32 %v485, %v486
          %v488 = vrot.slane %v487, 1
          %v489 = vadd.f32 %v487, %v488
          %v490 = vsel %vm388, %v424, 0.0
          %v491 = vrot.slane %v490, 4
          %v492 = vadd.f32 %v490, %v491
          %v493 = vrot.slane %v492, 2
          %v494 = vadd.f32 %v492, %v493
          %v495 = vrot.slane %v494, 1
          %v496 = vadd.f32 %v494, %v495
          %v497 = vsel %vm388, %v425, 0.0
          %v498 = vrot.slane %v497, 4
          %v499 = vadd.f32 %v497, %v498
          %v500 = vrot.slane %v499, 2
          %v501 = vadd.f32 %v499, %v500
          %v502 = vrot.slane %v501, 1
          %v503 = vadd.f32 %v501, %v502
          %v504 = vsel %vm388, %v426, 0.0
          %v505 = vrot.slane %v504, 4
          %v506 = vadd.f32 %v504, %v505
          %v507 = vrot.slane %v506, 2
          %v508 = vadd.f32 %v506, %v507
          %v509 = vrot.slane %v508, 1
          %v510 = vadd.f32 %v508, %v509
          %v511 = vsel %vm388, %v427, 0.0
          %v512 = vrot.slane %v511, 4
          %v513 = vadd.f32 %v511, %v512
          %v514 = vrot.slane %v513, 2
          %v515 = vadd.f32 %v513, %v514
          %v516 = vrot.slane %v515, 1
          %v517 = vadd.f32 %v515, %v516
          %v518 = vsel %vm388, %v428, 0.0
          %v519 = vrot.slane %v518, 4
          %v520 = vadd.f32 %v518, %v519
          %v521 = vrot.slane %v520, 2
          %v522 = vadd.f32 %v520, %v521
          %v523 = vrot.slane %v522, 1
          %v524 = vadd.f32 %v522, %v523
          %v525 = vsel %vm388, %v429, 0.0
          %v526 = vrot.slane %v525, 4
          %v527 = vadd.f32 %v525, %v526
          %v528 = vrot.slane %v527, 2
          %v529 = vadd.f32 %v527, %v528
          %v530 = vrot.slane %v529, 1
          %v531 = vadd.f32 %v529, %v530
          %v532 = vsel %vm388, %v430, 0.0
          %v533 = vrot.slane %v532, 4
          %v534 = vadd.f32 %v532, %v533
          %v535 = vrot.slane %v534, 2
          %v536 = vadd.f32 %v534, %v535
          %v537 = vrot.slane %v536, 1
          %v538 = vadd.f32 %v536, %v537
          %v539 = vsel %vm388, %v431, 0.0
          %v540 = vrot.slane %v539, 4
          %v541 = vadd.f32 %v539, %v540
          %v542 = vrot.slane %v541, 2
          %v543 = vadd.f32 %v541, %v542
          %v544 = vrot.slane %v543, 1
          %v545 = vadd.f32 %v543, %v544
          %v546 = vsel %vm388, %v432, 0.0
          %v547 = vrot.slane %v546, 4
          %v548 = vadd.f32 %v546, %v547
          %v549 = vrot.slane %v548, 2
          %v550 = vadd.f32 %v548, %v549
          %v551 = vrot.slane %v550, 1
          %v552 = vadd.f32 %v550, %v551
          %v553 = vsel %vm388, %v433, 0.0
          %v554 = vrot.slane %v553, 4
          %v555 = vadd.f32 %v553, %v554
          %v556 = vrot.slane %v555, 2
          %v557 = vadd.f32 %v555, %v556
          %v558 = vrot.slane %v557, 1
          %v559 = vadd.f32 %v557, %v558
          %v560 = vsel %vm388, %v434, 0.0
          %v561 = vrot.slane %v560, 4
          %v562 = vadd.f32 %v560, %v561
          %v563 = vrot.slane %v562, 2
          %v564 = vadd.f32 %v562, %v563
          %v565 = vrot.slane %v564, 1
          %v566 = vadd.f32 %v564, %v565
          %v567 = vsel %vm388, %v435, 0.0
          %v568 = vrot.slane %v567, 4
          %v569 = vadd.f32 %v567, %v568
          %v570 = vrot.slane %v569, 2
          %v571 = vadd.f32 %v569, %v570
          %v572 = vrot.slane %v571, 1
          %v573 = vadd.f32 %v571, %v572
          %v574 = vsel %vm388, %v436, 0.0
          %v575 = vrot.slane %v574, 4
          %v576 = vadd.f32 %v574, %v575
          %v577 = vrot.slane %v576, 2
          %v578 = vadd.f32 %v576, %v577
          %v579 = vrot.slane %v578, 1
          %v580 = vadd.f32 %v578, %v579
          %v581 = vsel %vm388, %v437, 0.0
          %v582 = vrot.slane %v581, 4
          %v583 = vadd.f32 %v581, %v582
          %v584 = vrot.slane %v583, 2
          %v585 = vadd.f32 %v583, %v584
          %v586 = vrot.slane %v585, 1
          %v587 = vadd.f32 %v585, %v586
          %v588 = vsel %vm388, %v438, 0.0
          %v589 = vrot.slane %v588, 4
          %v590 = vadd.f32 %v588, %v589
          %v591 = vrot.slane %v590, 2
          %v592 = vadd.f32 %v590, %v591
          %v593 = vrot.slane %v592, 1
          %v594 = vadd.f32 %v592, %v593
          %v595 = vsel %vm388, %v439, 0.0
          %v596 = vrot.slane %v595, 4
          %v597 = vadd.f32 %v595, %v596
          %v598 = vrot.slane %v597, 2
          %v599 = vadd.f32 %v597, %v598
          %v600 = vrot.slane %v599, 1
          %v601 = vadd.f32 %v599, %v600
          %v602 = vsel %vm388, %v440, 0.0
          %v603 = vrot.slane %v602, 4
          %v604 = vadd.f32 %v602, %v603
          %v605 = vrot.slane %v604, 2
          %v606 = vadd.f32 %v604, %v605
          %v607 = vrot.slane %v606, 1
          %v608 = vadd.f32 %v606, %v607
          %vm633 = vcmask 1041409
          %v634 = vsel %vm633, %v454, %v447
          %vm635 = vcmask 1042434
          %v636 = vsel %vm635, %v461, %v634
          %vm637 = vcmask 1043459
          %v638 = vsel %vm637, %v468, %v636
          %v639 = vsel %vm633, %v482, %v475
          %v640 = vsel %vm635, %v489, %v639
          %v641 = vsel %vm637, %v496, %v640
          %v642 = vsel %vm633, %v510, %v503
          %v643 = vsel %vm635, %v517, %v642
          %v644 = vsel %vm637, %v524, %v643
          %v645 = vsel %vm633, %v538, %v531
          %v646 = vsel %vm635, %v545, %v645
          %v647 = vsel %vm637, %v552, %v646
          %v648 = vsel %vm633, %v566, %v559
          %v649 = vsel %vm635, %v573, %v648
          %v650 = vsel %vm637, %v580, %v649
          %v651 = vsel %vm633, %v594, %v587
          %v652 = vsel %vm635, %v601, %v651
          %v653 = vsel %vm637, %v608, %v652
          %vm660 = vcmask 125952
          %661 = vst.msk [vmem:[%s236] sm:$0xf] %vm660, %v638
          %662 = vst.msk [vmem:[%s236 + $0x4] sm:$0xf] %vm660, %v641
          %663 = vst.msk [vmem:[%s236 + $0x8] sm:$0xf] %vm660, %v644
          %664 = vst.msk [vmem:[%s236 + $0xc] sm:$0xf] %vm660, %v647
          %665 = vst.msk [vmem:[%s236 + $0x10] sm:$0xf] %vm660, %v650
          %666 = vst.msk [vmem:[%s236 + $0x14] sm:$0xf] %vm660, %v653
        $region44: #{tpu_custom_call.1} parent=27 // pred_fallthru
          _
        %s667 = sand.u32 %s111, 1
        %s668 = scalar_lea.sflag [#allocation5], %s667
        %s669 = sand.u32 %s111, 1
        %s670 = smul.addr %s669, 24
        %s671 = scalar_lea.vmem [#allocation8], %s670
        // Predicated region
        $region45: #{tpu_custom_call.1} parent=27 // pred_check
          %p672 = pneg %p121
        $region46: #{tpu_custom_call.1} parent=27 // pred_check_branch
          %674 = sbr.rel (%p672) target = $region48
        $region47: #{tpu_custom_call.1} parent=27 // pred_region
          %676 = vsyncadd %s668, 0
          %s677 = smul.addr %s27, 6
          %s678 = sadd.s32 %s28, %s677
          %s679 = smul.addr %s678, 4
          %s680 = scalar_lea.hbm %s2, %s679
          %s681 = sshll.u32 %s671, 4
          %s682 = int_to_ptr.vmem [resolvable:$true] %s681
          %s683 = sshll.u32 %s680, 4
          %s684 = int_to_ptr.hbm [resolvable:$true] %s683
          %689 = dma.vmem_to_hbm [thread:$0]  %s682, 384, %s684, %s668, 64, 64, 4
        $region48: #{tpu_custom_call.1} parent=27 // pred_fallthru
          _
      $region28: #{tpu_custom_call.1} parent=5 // pred_fallthru
        _
      %p690 = scmp.le.s32.totalorder 2, %s17
      // Predicated region
      $region49: #{tpu_custom_call.1} parent=5 // pred_check
        %p691 = pneg %p690
      $region50: #{tpu_custom_call.1} parent=5 // pred_check_branch
        %693 = sbr.rel (%p691) target = $region52
      $region51: #{tpu_custom_call.1} parent=5 // pred_region
        %s694 = ssub.s32 %s17, 2
        // Predicated region
        $region53: #{tpu_custom_call.1} parent=51 // pred_check
          %p695 = pneg %p127
        $region54: #{tpu_custom_call.1} parent=51 // pred_check_branch
          %697 = sbr.rel (%p695) target = $region56
        $region55: #{tpu_custom_call.1} parent=51 // pred_region
          %s698 = sand.u32 %s112, 1
          %s699 = scalar_lea.sflag [#allocation5], %s698
          %s700 = sand.u32 %s112, 1
          %s701 = smul.addr %s700, 24
          %s702 = scalar_lea.vmem [#allocation8], %s701
          %704 = dma.done %s699, 384
        $region56: #{tpu_custom_call.1} parent=51 // pred_fallthru
          _
      $region52: #{tpu_custom_call.1} parent=5 // pred_fallthru
        _
    $region6: #{tpu_custom_call.1} parent=1 // loop_footer
      %s21 = sadd.s32 1, %s17
    $region7: #{tpu_custom_call.1} parent=1 // loop_footer_branch
      %16 = sbr.rel target = $region3
    $region8: #{tpu_custom_call.1} parent=1 // loop_exit
      _
    %705 = vsyncpa [#allocation4], 1
    %s706 = scalar_lea.sflag [#allocation4], 1
    %707 = vsyncpa %s706, 1
    %708 = vsyncpa [#allocation7], 1
    %s709 = scalar_lea.sflag [#allocation7], 1
    %710 = vsyncpa %s709, 1
    %711 = vsyncpa [#allocation5], 1
    %s712 = scalar_lea.sflag [#allocation5], 1
    %713 = vsyncpa %s712, 1

</llo_original>
